<compile_context>
chip_gen: v5e
topology: v5e:2x2
jax: 0.10.0
libtpu: 0.0.40
codegen_flags: <defaults>
</compile_context>

<pallas_src>
import functools

import jax
import jax.numpy as jnp
from jax.experimental import pallas as pl
from jax.experimental.pallas import tpu as pltpu

EPS = 1e-5
INPUT_DIM = 3
HIDDEN_DIMS = [64, 128, 64]
PAD_IN = 8  # zero-pad input features 3 -> 8 (sublane-friendly K for first matmul)


def _round_up(n, m):
    return ((n + m - 1) // m) * m


def mlp_kernel(x_ref, w1, b1, w2, b2, w3, b3, w4, b4, o_ref):
    """One batch tile of the whole MLP.

    BatchNorm (eval) is pre-folded into the following layer's weights/bias, so
    the body is 3x [bf16 matmul (f32 acc) -> f32 bias -> f32 ReLU] + final matmul.
    Dropout(p=0.1) is identity in eval mode.
    """
    h = x_ref[...]                                                       # (TB, 8) bf16
    z = jnp.dot(h, w1[...], preferred_element_type=jnp.float32) + b1[...]
    h = jnp.maximum(z, 0.0).astype(jnp.bfloat16)                         # (TB, 64)
    z = jnp.dot(h, w2[...], preferred_element_type=jnp.float32) + b2[...]
    h = jnp.maximum(z, 0.0).astype(jnp.bfloat16)                         # (TB, 128)
    z = jnp.dot(h, w3[...], preferred_element_type=jnp.float32) + b3[...]
    h = jnp.maximum(z, 0.0).astype(jnp.bfloat16)                         # (TB, 64)
    o_ref[...] = jnp.dot(h, w4[...], preferred_element_type=jnp.float32) + b4[...]


def init_params(key):
    """Deterministic parameter init (PyTorch-like shapes; BN at default affine
    init plus non-trivial running stats so the BN path is actually exercised)."""
    dims = [INPUT_DIM] + HIDDEN_DIMS
    params = {}
    for li in range(3):
        d_in, d_out = dims[li], dims[li + 1]
        key, kw, kb, km, kv = jax.random.split(key, 5)
        bound = 1.0 / jnp.sqrt(d_in)
        params[f"w{li + 1}"] = jax.random.uniform(kw, (d_in, d_out), jnp.float32, -bound, bound)
        params[f"b{li + 1}"] = jax.random.uniform(kb, (1, d_out), jnp.float32, -bound, bound)
        params[f"g{li + 1}"] = jnp.ones((1, d_out), jnp.float32)                          # BN gamma
        params[f"be{li + 1}"] = jnp.zeros((1, d_out), jnp.float32)                        # BN beta
        params[f"m{li + 1}"] = 0.1 * jax.random.normal(km, (1, d_out), jnp.float32)       # running_mean
        params[f"v{li + 1}"] = 1.0 + 0.1 * jax.random.uniform(kv, (1, d_out), jnp.float32)  # running_var
    key, kw, kb = jax.random.split(key, 3)
    bound = 1.0 / jnp.sqrt(dims[-1])
    params["w4"] = jax.random.uniform(kw, (dims[-1], 1), jnp.float32, -bound, bound)
    params["b4"] = jax.random.uniform(kb, (1, 1), jnp.float32, -bound, bound)
    return params


def prepare_params(params):
    """One-time glue, hoisted out of the per-call path:
      * fold each eval-mode BatchNorm into the NEXT layer's weight/bias:
          inv_k = g_k / sqrt(v_k + eps);  shift_k = be_k - m_k * inv_k
          W_{k+1}' = diag(inv_k) @ W_{k+1};  b_{k+1}' = shift_k @ W_{k+1} + b_{k+1}
      * zero-pad W1's contraction dim 3 -> 8 (matches the padded x),
      * cast matmul weights to bf16 (MXU-native); biases stay f32.
    """
    def bn_fold(g, be, m, v):
        inv = g / jnp.sqrt(v + EPS)    # (1, d)
        shift = be - m * inv           # (1, d)
        return inv, shift

    inv1, sh1 = bn_fold(params["g1"], params["be1"], params["m1"], params["v1"])
    inv2, sh2 = bn_fold(params["g2"], params["be2"], params["m2"], params["v2"])
    inv3, sh3 = bn_fold(params["g3"], params["be3"], params["m3"], params["v3"])

    w1 = jnp.zeros((PAD_IN, HIDDEN_DIMS[0]), jnp.float32).at[:INPUT_DIM, :].set(params["w1"])
    b1 = params["b1"]
    w2 = params["w2"] * inv1.reshape(-1, 1)
    b2 = sh1 @ params["w2"] + params["b2"]
    w3 = params["w3"] * inv2.reshape(-1, 1)
    b3 = sh2 @ params["w3"] + params["b3"]
    w4 = params["w4"] * inv3.reshape(-1, 1)
    b4 = sh3 @ params["w4"] + params["b4"]

    bf16 = lambda a: a.astype(jnp.bfloat16)
    return dict(w1=bf16(w1), b1=b1, w2=bf16(w2), b2=b2,
                w3=bf16(w3), b3=b3, w4=bf16(w4), b4=b4)


@functools.partial(jax.jit, static_argnames=("tb",))
def simple_regressor_forward(x, prep, tb=512):
    B, F = x.shape
    assert F == INPUT_DIM
    # Batch tile: large (512) for throughput; shrink to the (8-rounded) batch for
    # tiny inputs so we don't over-pad. Pad B to a TB multiple so every grid
    # block is full (no partial-tile garbage); padded rows are sliced off below.
    TB = min(tb, _round_up(max(B, 1), 8))
    B_pad = _round_up(B, TB)
    num_tiles = B_pad // TB

    # Pad features 3 -> 8 with zeros (mathematically identical) and cast to bf16.
    x_p = jnp.zeros((B_pad, PAD_IN), jnp.bfloat16)
    x_p = x_p.at[:B, :F].set(x.astype(jnp.bfloat16))

    weight_args = (prep["w1"], prep["b1"], prep["w2"], prep["b2"],
                   prep["w3"], prep["b3"], prep["w4"], prep["b4"])
    # Full-array, index-constant specs: weights/biases stay VMEM-resident across
    # all batch tiles (no per-step re-DMA).
    resident = lambda a: pl.BlockSpec(a.shape, lambda i: (0, 0))

    out = pl.pallas_call(
        mlp_kernel,
        out_shape=jax.ShapeDtypeStruct((B_pad, 1), jnp.float32),
        grid_spec=pltpu.PrefetchScalarGridSpec(
            num_scalar_prefetch=0,
            grid=(num_tiles,),
            in_specs=[pl.BlockSpec((TB, PAD_IN), lambda i: (i, 0))]
                     + [resident(a) for a in weight_args],
            out_specs=pl.BlockSpec((TB, 1), lambda i: (i, 0)),
        ),
        compiler_params=pltpu.CompilerParams(
            dimension_semantics=("parallel",)),  # megacore sharding on v7x
    )(x_p, *weight_args)

    return out[:B]


def reference_forward(x, params):
    """Pure-JAX f32 reference (unfolded BN, eval mode) for correctness checking."""
    h = x.astype(jnp.float32)
    for li in range(3):
        w, b = params[f"w{li + 1}"], params[f"b{li + 1}"]
        g, be = params[f"g{li + 1}"], params[f"be{li + 1}"]
        m, v = params[f"m{li + 1}"], params[f"v{li + 1}"]
        z = h @ w + b
        z = jnp.maximum(z, 0.0)
        h = (z - m) * (g / jnp.sqrt(v + EPS)) + be
    return h @ params["w4"] + params["b4"]


if __name__ == "__main__":
    key = jax.random.PRNGKey(0)
    key, kx = jax.random.split(key)
    B = 8
    x = jax.random.normal(kx, (B, INPUT_DIM), jnp.float32)
    params = init_params(key)
    prep = prepare_params(params)   # one-time: BN fold + pad + bf16 cast

    y = simple_regressor_forward(x, prep)
    y = jax.block_until_ready(y)

    y_ref = reference_forward(x, params)
    assert y.shape == (B, 1)
    # bf16 MXU operands -> loosened tolerance vs the f32 reference.
    assert jnp.allclose(y, y_ref, atol=5e-2, rtol=5e-2), (y, y_ref)

    print("KERNEL_OK")
</pallas_src>

<mosaic_0001>
module attributes {stable_mosaic.version = 11 : i64} {
  func.func @mlp_kernel(%arg0: i32, %arg1: memref<8x8xbf16, #tpu.memory_space<vmem>>, %arg2: memref<8x64xbf16, #tpu.memory_space<vmem>>, %arg3: memref<1x64xf32, #tpu.memory_space<vmem>>, %arg4: memref<64x128xbf16, #tpu.memory_space<vmem>>, %arg5: memref<1x128xf32, #tpu.memory_space<vmem>>, %arg6: memref<128x64xbf16, #tpu.memory_space<vmem>>, %arg7: memref<1x64xf32, #tpu.memory_space<vmem>>, %arg8: memref<64x1xbf16, #tpu.memory_space<vmem>>, %arg9: memref<1x1xf32, #tpu.memory_space<vmem>>, %arg10: memref<8x1xf32, #tpu.memory_space<vmem>>) attributes {dimension_semantics = [#tpu.dimension_semantics<parallel>], iteration_bounds = array<i64: 1>, scalar_prefetch = 0 : i64, scratch_operands = 0 : i64, tpu.core_type = #tpu.core_type<tc>, window_params = [{transform_indices = @transform_0, window_bounds = array<i64: 8, 8>}, {pipeline_mode = #tpu.pipeline_mode<synchronous>, transform_indices = @transform_1, window_bounds = array<i64: 8, 64>}, {pipeline_mode = #tpu.pipeline_mode<synchronous>, transform_indices = @transform_2, window_bounds = array<i64: 1, 64>}, {pipeline_mode = #tpu.pipeline_mode<synchronous>, transform_indices = @transform_3, window_bounds = array<i64: 64, 128>}, {pipeline_mode = #tpu.pipeline_mode<synchronous>, transform_indices = @transform_4, window_bounds = array<i64: 1, 128>}, {pipeline_mode = #tpu.pipeline_mode<synchronous>, transform_indices = @transform_5, window_bounds = array<i64: 128, 64>}, {pipeline_mode = #tpu.pipeline_mode<synchronous>, transform_indices = @transform_6, window_bounds = array<i64: 1, 64>}, {pipeline_mode = #tpu.pipeline_mode<synchronous>, transform_indices = @transform_7, window_bounds = array<i64: 64, 1>}, {pipeline_mode = #tpu.pipeline_mode<synchronous>, transform_indices = @transform_8, window_bounds = array<i64: 1, 1>}, {transform_indices = @transform_9, window_bounds = array<i64: 8, 1>}]} {
    %c0 = arith.constant 0 : index
    %c0_0 = arith.constant 0 : index
    %0 = vector.load %arg1[%c0, %c0_0] : memref<8x8xbf16, #tpu.memory_space<vmem>>, vector<8x8xbf16>
    %c0_1 = arith.constant 0 : index
    %c0_2 = arith.constant 0 : index
    %1 = vector.load %arg2[%c0_1, %c0_2] : memref<8x64xbf16, #tpu.memory_space<vmem>>, vector<8x64xbf16>
    %cst = arith.constant dense<0.000000e+00> : vector<8x64xf32>
    %2 = tpu.matmul %0, %1, %cst {dimension_numbers = #tpu.dot_dimension_numbers<[1], [0], [0], [1], [0, 0, 1, 1], [], []>} : vector<8x8xbf16>, vector<8x64xbf16>, vector<8x64xf32> -> vector<8x64xf32>
    %c0_3 = arith.constant 0 : index
    %c0_4 = arith.constant 0 : index
    %3 = vector.load %arg3[%c0_3, %c0_4] : memref<1x64xf32, #tpu.memory_space<vmem>>, vector<1x64xf32>
    %4 = vector.broadcast %3 : vector<1x64xf32> to vector<8x64xf32>
    %5 = arith.addf %2, %4 : vector<8x64xf32>
    %cst_5 = arith.constant 0.000000e+00 : f32
    %6 = vector.broadcast %cst_5 : f32 to vector<8x64xf32>
    %7 = arith.maximumf %5, %6 : vector<8x64xf32>
    %8 = arith.truncf %7 : vector<8x64xf32> to vector<8x64xbf16>
    %c0_6 = arith.constant 0 : index
    %c0_7 = arith.constant 0 : index
    %9 = vector.load %arg4[%c0_6, %c0_7] : memref<64x128xbf16, #tpu.memory_space<vmem>>, vector<64x128xbf16>
    %cst_8 = arith.constant dense<0.000000e+00> : vector<8x128xf32>
    %10 = tpu.matmul %8, %9, %cst_8 {dimension_numbers = #tpu.dot_dimension_numbers<[1], [0], [0], [1], [0, 0, 1, 1], [], []>} : vector<8x64xbf16>, vector<64x128xbf16>, vector<8x128xf32> -> vector<8x128xf32>
    %c0_9 = arith.constant 0 : index
    %c0_10 = arith.constant 0 : index
    %11 = vector.load %arg5[%c0_9, %c0_10] : memref<1x128xf32, #tpu.memory_space<vmem>>, vector<1x128xf32>
    %12 = vector.broadcast %11 : vector<1x128xf32> to vector<8x128xf32>
    %13 = arith.addf %10, %12 : vector<8x128xf32>
    %cst_11 = arith.constant 0.000000e+00 : f32
    %14 = vector.broadcast %cst_11 : f32 to vector<8x128xf32>
    %15 = arith.maximumf %13, %14 : vector<8x128xf32>
    %16 = arith.truncf %15 : vector<8x128xf32> to vector<8x128xbf16>
    %c0_12 = arith.constant 0 : index
    %c0_13 = arith.constant 0 : index
    %17 = vector.load %arg6[%c0_12, %c0_13] : memref<128x64xbf16, #tpu.memory_space<vmem>>, vector<128x64xbf16>
    %cst_14 = arith.constant dense<0.000000e+00> : vector<8x64xf32>
    %18 = tpu.matmul %16, %17, %cst_14 {dimension_numbers = #tpu.dot_dimension_numbers<[1], [0], [0], [1], [0, 0, 1, 1], [], []>} : vector<8x128xbf16>, vector<128x64xbf16>, vector<8x64xf32> -> vector<8x64xf32>
    %c0_15 = arith.constant 0 : index
    %c0_16 = arith.constant 0 : index
    %19 = vector.load %arg7[%c0_15, %c0_16] : memref<1x64xf32, #tpu.memory_space<vmem>>, vector<1x64xf32>
    %20 = vector.broadcast %19 : vector<1x64xf32> to vector<8x64xf32>
    %21 = arith.addf %18, %20 : vector<8x64xf32>
    %cst_17 = arith.constant 0.000000e+00 : f32
    %22 = vector.broadcast %cst_17 : f32 to vector<8x64xf32>
    %23 = arith.maximumf %21, %22 : vector<8x64xf32>
    %24 = arith.truncf %23 : vector<8x64xf32> to vector<8x64xbf16>
    %c0_18 = arith.constant 0 : index
    %c0_19 = arith.constant 0 : index
    %25 = vector.load %arg8[%c0_18, %c0_19] : memref<64x1xbf16, #tpu.memory_space<vmem>>, vector<64x1xbf16>
    %cst_20 = arith.constant dense<0.000000e+00> : vector<8x1xf32>
    %26 = tpu.matmul %24, %25, %cst_20 {dimension_numbers = #tpu.dot_dimension_numbers<[1], [0], [0], [1], [0, 0, 1, 1], [], []>} : vector<8x64xbf16>, vector<64x1xbf16>, vector<8x1xf32> -> vector<8x1xf32>
    %c0_21 = arith.constant 0 : index
    %c0_22 = arith.constant 0 : index
    %27 = vector.load %arg9[%c0_21, %c0_22] : memref<1x1xf32, #tpu.memory_space<vmem>>, vector<1x1xf32>
    %28 = vector.broadcast %27 : vector<1x1xf32> to vector<8x1xf32>
    %29 = arith.addf %26, %28 : vector<8x1xf32>
    %c0_23 = arith.constant 0 : index
    %c0_24 = arith.constant 0 : index
    %30 = vector.load %arg10[%c0_23, %c0_24] : memref<8x1xf32, #tpu.memory_space<vmem>>, vector<8x1xf32>
    tpu.vector_store %arg10[%c0_23, %c0_24], %29 {strides = array<i32>} : memref<8x1xf32, #tpu.memory_space<vmem>>, vector<8x1xf32>,
    return
  }
  func.func @transform_0(%arg0: i32) -> (i32, i32) {
    %c0_i32 = arith.constant 0 : i32
    %c0_i32_0 = arith.constant 0 : i32
    return %arg0, %c0_i32 : i32, i32
  }
  func.func @transform_1(%arg0: i32) -> (i32, i32) {
    %c0_i32 = arith.constant 0 : i32
    %c0_i32_0 = arith.constant 0 : i32
    %c0_i32_1 = arith.constant 0 : i32
    return %c0_i32, %c0_i32_0 : i32, i32
  }
  func.func @transform_2(%arg0: i32) -> (i32, i32) {
    %c0_i32 = arith.constant 0 : i32
    %c0_i32_0 = arith.constant 0 : i32
    %c0_i32_1 = arith.constant 0 : i32
    return %c0_i32, %c0_i32_0 : i32, i32
  }
  func.func @transform_3(%arg0: i32) -> (i32, i32) {
    %c0_i32 = arith.constant 0 : i32
    %c0_i32_0 = arith.constant 0 : i32
    %c0_i32_1 = arith.constant 0 : i32
    return %c0_i32, %c0_i32_0 : i32, i32
  }
  func.func @transform_4(%arg0: i32) -> (i32, i32) {
    %c0_i32 = arith.constant 0 : i32
    %c0_i32_0 = arith.constant 0 : i32
    %c0_i32_1 = arith.constant 0 : i32
    return %c0_i32, %c0_i32_0 : i32, i32
  }
  func.func @transform_5(%arg0: i32) -> (i32, i32) {
    %c0_i32 = arith.constant 0 : i32
    %c0_i32_0 = arith.constant 0 : i32
    %c0_i32_1 = arith.constant 0 : i32
    return %c0_i32, %c0_i32_0 : i32, i32
  }
  func.func @transform_6(%arg0: i32) -> (i32, i32) {
    %c0_i32 = arith.constant 0 : i32
    %c0_i32_0 = arith.constant 0 : i32
    %c0_i32_1 = arith.constant 0 : i32
    return %c0_i32, %c0_i32_0 : i32, i32
  }
  func.func @transform_7(%arg0: i32) -> (i32, i32) {
    %c0_i32 = arith.constant 0 : i32
    %c0_i32_0 = arith.constant 0 : i32
    %c0_i32_1 = arith.constant 0 : i32
    return %c0_i32, %c0_i32_0 : i32, i32
  }
  func.func @transform_8(%arg0: i32) -> (i32, i32) {
    %c0_i32 = arith.constant 0 : i32
    %c0_i32_0 = arith.constant 0 : i32
    %c0_i32_1 = arith.constant 0 : i32
    return %c0_i32, %c0_i32_0 : i32, i32
  }
  func.func @transform_9(%arg0: i32) -> (i32, i32) {
    %c0_i32 = arith.constant 0 : i32
    %c0_i32_0 = arith.constant 0 : i32
    return %arg0, %c0_i32 : i32, i32
  }
}

</mosaic_0001>

<llo_original>
// kernel: simple_regressor_forward.1
$region0: #{simple_regressor_forward.1}
  #allocation0 [shape = 'u32[]', space=smem, size = 0x4, offset = 0x4, fixed_abs, tag = 'smem constant byte address 0x4 - core index']
  #allocation1 [shape = 'u32[72,128]{1,0:T(1,128)}', space=vmem, size = 0x9000, scoped, tag = 'internal scratch']
  #allocation2 [shape = 'f32[1,1]{1,0:T(1,128)S(1)}', space=vmem, size = 0x200, scoped, tag = 'scoped memory for simple_regressor_forward.1']
  %s0 = inlined_call_operand.vmem [shape: bf16[8,8], index: 0, kind: input, shape index: {}]
  %s1 = inlined_call_operand.vmem [shape: bf16[8,64], index: 1, kind: input, shape index: {}]
  %s2 = inlined_call_operand.vmem [shape: f32[1,64], index: 2, kind: input, shape index: {}]
  %s3 = inlined_call_operand.vmem [shape: bf16[64,128], index: 3, kind: input, shape index: {}]
  %s4 = inlined_call_operand.vmem [shape: f32[1,128], index: 4, kind: input, shape index: {}]
  %s5 = inlined_call_operand.vmem [shape: bf16[128,64], index: 5, kind: input, shape index: {}]
  %s6 = inlined_call_operand.vmem [shape: f32[1,64], index: 6, kind: input, shape index: {}]
  %s7 = inlined_call_operand.vmem [shape: bf16[64,1], index: 7, kind: input, shape index: {}]
  %s8 = inlined_call_operand.<no memory space> [shape: f32[1,1], index: 8, kind: input, shape index: {}]
  %s9 = inlined_call_operand.vmem [shape: f32[8,1], index: 9, kind: output, shape index: {}]
  %s10 = sld [smem:[#allocation0]]
  $region46: #{simple_regressor_forward.1} parent=0
    _
  %s12 = ssub.s32 1, %s10
  %s13 = scalar_select 0, %s12, %s10
  %v14 = vstv %s8
  %15 = vst [vmem:[#allocation2] sm:$0x1] %v14
  // Predicated region
  $region2: #{simple_regressor_forward.1} parent=0 // pred_check
    _
  $region3: #{simple_regressor_forward.1} parent=0 // pred_check_branch
    %17 = sbr.rel (0) target = $region5
  $region4: #{simple_regressor_forward.1} parent=0 // pred_region
    _
  $region5: #{simple_regressor_forward.1} parent=0 // pred_fallthru
    _
  // Predicated region
  $region6: #{simple_regressor_forward.1} parent=0 // pred_check
    _
  $region7: #{simple_regressor_forward.1} parent=0 // pred_check_branch
    %19 = sbr.rel (0) target = $region9
  $region8: #{simple_regressor_forward.1} parent=0 // pred_region
    _
  $region9: #{simple_regressor_forward.1} parent=0 // pred_fallthru
    _
  // Predicated region
  $region10: #{simple_regressor_forward.1} parent=0 // pred_check
    _
  $region11: #{simple_regressor_forward.1} parent=0 // pred_check_branch
    %21 = sbr.rel (0) target = $region13
  $region12: #{simple_regressor_forward.1} parent=0 // pred_region
    _
  $region13: #{simple_regressor_forward.1} parent=0 // pred_fallthru
    _
  // Predicated region
  $region14: #{simple_regressor_forward.1} parent=0 // pred_check
    _
  $region15: #{simple_regressor_forward.1} parent=0 // pred_check_branch
    %23 = sbr.rel (0) target = $region17
  $region16: #{simple_regressor_forward.1} parent=0 // pred_region
    _
  $region17: #{simple_regressor_forward.1} parent=0 // pred_fallthru
    _
  // Predicated region
  $region18: #{simple_regressor_forward.1} parent=0 // pred_check
    _
  $region19: #{simple_regressor_forward.1} parent=0 // pred_check_branch
    %25 = sbr.rel (0) target = $region21
  $region20: #{simple_regressor_forward.1} parent=0 // pred_region
    _
  $region21: #{simple_regressor_forward.1} parent=0 // pred_fallthru
    _
  // Predicated region
  $region22: #{simple_regressor_forward.1} parent=0 // pred_check
    _
  $region23: #{simple_regressor_forward.1} parent=0 // pred_check_branch
    %27 = sbr.rel (0) target = $region25
  $region24: #{simple_regressor_forward.1} parent=0 // pred_region
    _
  $region25: #{simple_regressor_forward.1} parent=0 // pred_fallthru
    _
  // Predicated region
  $region26: #{simple_regressor_forward.1} parent=0 // pred_check
    _
  $region27: #{simple_regressor_forward.1} parent=0 // pred_check_branch
    %29 = sbr.rel (0) target = $region29
  $region28: #{simple_regressor_forward.1} parent=0 // pred_region
    _
  $region29: #{simple_regressor_forward.1} parent=0 // pred_fallthru
    _
  // Predicated region
  $region30: #{simple_regressor_forward.1} parent=0 // pred_check
    _
  $region31: #{simple_regressor_forward.1} parent=0 // pred_check_branch
    %31 = sbr.rel (0) target = $region33
  $region32: #{simple_regressor_forward.1} parent=0 // pred_region
    _
  $region33: #{simple_regressor_forward.1} parent=0 // pred_fallthru
    _
  // Predicated region
  $region34: #{simple_regressor_forward.1} parent=0 // pred_check
    _
  $region35: #{simple_regressor_forward.1} parent=0 // pred_check_branch
    %33 = sbr.rel (0) target = $region37
  $region36: #{simple_regressor_forward.1} parent=0 // pred_region
    _
  $region37: #{simple_regressor_forward.1} parent=0 // pred_fallthru
    _
  %v35 = vld [vmem:[%s0] sm:$0xf]
  %v36 = vld [vmem:[%s1] sm:$0xf]
  %v37 = vld [vmem:[%s2] sm:$0x1]
  %v39 = vperm.slane %v37, 0
  %vm41 = vcmask 64512
  %v43 = vsel %vm41, %v35, 0
  %vm45 = vcmask 1043456
  %v47 = vsel %vm45, %v36, 0
  %49 = vmatpush.bf16.msra.mxu0 0
  %50 = vmatpush.bf16.msra.mxu0 0
  %51 = vmatpush.bf16.msra.mxu0 0
  %52 = vmatpush.bf16.msra.mxu0 0
  %53 = vmatpush.bf16.msra.mxu0 0
  %54 = vmatpush.bf16.msra.mxu0 0
  %55 = vmatpush.bf16.msra.mxu0 0
  %56 = vmatpush.bf16.msra.mxu0 %v47
  %57 = vmatmul.bf16.gmra.mxu0 %v43
  %v58 = vpop.f32.mrf.mxu0
  %v59 = vadd.f32 %v39, %v58
  %v60 = vpop.f32.mrf.mxu0
  %61 = vdwg.mxu0
  %v62 = vmax.f32 %v59, 0.0
  %v63 = vpack.c.bf16 %v62, %v62
  %v64 = vld [vmem:[%s3] sm:$0xf]
  %v65 = vld [vmem:[%s3 + $0x4] sm:$0xf]
  %v66 = vld [vmem:[%s3 + $0x8] sm:$0xf]
  %v67 = vld [vmem:[%s3 + $0xc] sm:$0xf]
  %v68 = vld [vmem:[%s3 + $0x10] sm:$0xf]
  %v69 = vld [vmem:[%s3 + $0x14] sm:$0xf]
  %v70 = vld [vmem:[%s3 + $0x18] sm:$0xf]
  %v71 = vld [vmem:[%s3 + $0x1c] sm:$0xf]
  %v72 = vld [vmem:[%s4] sm:$0x1]
  %v74 = vperm.slane %v72, 0
  %v84 = vunpack.c.l.b16 %v64
  %v85 = vunpack.c.l.b16 %v65
  %v86 = vunpack.c.l.b16 %v66
  %v87 = vunpack.c.l.b16 %v67
  %v88 = vunpack.c.l.b16 %v68
  %v89 = vunpack.c.l.b16 %v69
  %v90 = vunpack.c.l.b16 %v70
  %v91 = vunpack.c.l.b16 %v71
  %v92 = vpack.c.b16 %v85, %v84
  %v93 = vpack.c.b16 %v87, %v86
  %v94 = vpack.c.b16 %v89, %v88
  %v95 = vpack.c.b16 %v91, %v90
  %vm100 = vcmask 523264
  %v102 = vsel %vm100, %v63, 0
  %104 = vmatpush.bf16.msra.mxu0 0
  %105 = vmatpush.bf16.msra.mxu0 0
  %106 = vmatpush.bf16.msra.mxu0 0
  %107 = vmatpush.bf16.msra.mxu0 0
  %108 = vmatpush.bf16.msra.mxu0 %v95
  %109 = vmatpush.bf16.msra.mxu0 %v94
  %110 = vmatpush.bf16.msra.mxu0 %v93
  %111 = vmatpush.bf16.msra.mxu0 %v92
  %112 = vmatmul.bf16.gmra.mxu0 %v102
  %v113 = vpop.f32.mrf.mxu0
  %v114 = vadd.f32 %v74, %v113
  %v115 = vpop.f32.mrf.mxu0
  %116 = vdwg.mxu0
  %v117 = vmax.f32 %v114, 0.0
  %v118 = vpack.c.bf16 %v117, %v117
  %v119 = vld [vmem:[%s5] sm:$0xf]
  %v120 = vld [vmem:[%s5 + $0x4] sm:$0xf]
  %v121 = vld [vmem:[%s5 + $0x8] sm:$0xf]
  %v122 = vld [vmem:[%s5 + $0xc] sm:$0xf]
  %v123 = vld [vmem:[%s5 + $0x10] sm:$0xf]
  %v124 = vld [vmem:[%s5 + $0x14] sm:$0xf]
  %v125 = vld [vmem:[%s5 + $0x18] sm:$0xf]
  %v126 = vld [vmem:[%s5 + $0x1c] sm:$0xf]
  %v127 = vld [vmem:[%s5 + $0x20] sm:$0xf]
  %v128 = vld [vmem:[%s5 + $0x24] sm:$0xf]
  %v129 = vld [vmem:[%s5 + $0x28] sm:$0xf]
  %v130 = vld [vmem:[%s5 + $0x2c] sm:$0xf]
  %v131 = vld [vmem:[%s5 + $0x30] sm:$0xf]
  %v132 = vld [vmem:[%s5 + $0x34] sm:$0xf]
  %v133 = vld [vmem:[%s5 + $0x38] sm:$0xf]
  %v134 = vld [vmem:[%s5 + $0x3c] sm:$0xf]
  %v135 = vld [vmem:[%s6] sm:$0x1]
  %v137 = vperm.slane %v135, 0
  %v155 = vunpack.c.l.b16 %v119
  %v156 = vunpack.c.l.b16 %v120
  %v157 = vunpack.c.l.b16 %v121
  %v158 = vunpack.c.l.b16 %v122
  %v159 = vunpack.c.l.b16 %v123
  %v160 = vunpack.c.l.b16 %v124
  %v161 = vunpack.c.l.b16 %v125
  %v162 = vunpack.c.l.b16 %v126
  %v163 = vunpack.c.l.b16 %v127
  %v164 = vunpack.c.l.b16 %v128
  %v165 = vunpack.c.l.b16 %v129
  %v166 = vunpack.c.l.b16 %v130
  %v167 = vunpack.c.l.b16 %v131
  %v168 = vunpack.c.l.b16 %v132
  %v169 = vunpack.c.l.b16 %v133
  %v170 = vunpack.c.l.b16 %v134
  %v171 = vpack.c.b16 %v156, %v155
  %v172 = vpack.c.b16 %v158, %v157
  %v173 = vpack.c.b16 %v160, %v159
  %v174 = vpack.c.b16 %v162, %v161
  %v175 = vpack.c.b16 %v164, %v163
  %v176 = vpack.c.b16 %v166, %v165
  %v177 = vpack.c.b16 %v168, %v167
  %v178 = vpack.c.b16 %v170, %v169
  %187 = vmatpush.bf16.msra.mxu0 %v178
  %188 = vmatpush.bf16.msra.mxu0 %v177
  %189 = vmatpush.bf16.msra.mxu0 %v176
  %190 = vmatpush.bf16.msra.mxu0 %v175
  %191 = vmatpush.bf16.msra.mxu0 %v174
  %192 = vmatpush.bf16.msra.mxu0 %v173
  %193 = vmatpush.bf16.msra.mxu0 %v172
  %194 = vmatpush.bf16.msra.mxu0 %v171
  %195 = vmatmul.bf16.gmra.mxu0 %v118
  %v196 = vpop.f32.mrf.mxu0
  %v197 = vadd.f32 %v137, %v196
  %v198 = vpop.f32.mrf.mxu0
  %199 = vdwg.mxu0
  %v200 = vmax.f32 %v197, 0.0
  %v201 = vpack.c.bf16 %v200, %v200
  %v202 = vld [vmem:[%s7] sm:$0xf]
  %v203 = vld [vmem:[%s7 + $0x4] sm:$0xf]
  %v204 = vld [vmem:[%s7 + $0x8] sm:$0xf]
  %v205 = vld [vmem:[%s7 + $0xc] sm:$0xf]
  %v206 = vld [vmem:[%s7 + $0x10] sm:$0xf]
  %v207 = vld [vmem:[%s7 + $0x14] sm:$0xf]
  %v208 = vld [vmem:[%s7 + $0x18] sm:$0xf]
  %v209 = vld [vmem:[%s7 + $0x1c] sm:$0xf]
  %v210 = vld [vmem:[#allocation2] sm:$0x1]
  %v212 = vperm.slane %v210, 0
  %v222 = vunpack.c.l.b16 %v202
  %v223 = vunpack.c.l.b16 %v203
  %v224 = vunpack.c.l.b16 %v204
  %v225 = vunpack.c.l.b16 %v205
  %v226 = vunpack.c.l.b16 %v206
  %v227 = vunpack.c.l.b16 %v207
  %v228 = vunpack.c.l.b16 %v208
  %v229 = vunpack.c.l.b16 %v209
  %v230 = vpack.c.b16 %v223, %v222
  %v231 = vpack.c.b16 %v225, %v224
  %v232 = vpack.c.b16 %v227, %v226
  %v233 = vpack.c.b16 %v229, %v228
  %v239 = vsel %vm100, %v201, 0
  %241 = vmatpush.bf16.msra.mxu0 0
  %242 = vmatpush.bf16.msra.mxu0 0
  %243 = vmatpush.bf16.msra.mxu0 0
  %244 = vmatpush.bf16.msra.mxu0 0
  %245 = vmatpush.bf16.msra.mxu0 %v233
  %246 = vmatpush.bf16.msra.mxu0 %v232
  %247 = vmatpush.bf16.msra.mxu0 %v231
  %248 = vmatpush.bf16.msra.mxu0 %v230
  %249 = vmatmul.bf16.gmra.mxu0 %v239
  %v250 = vpop.f32.mrf.mxu0
  %v251 = vadd.f32 %v212, %v250
  %v252 = vpop.f32.mrf.mxu0
  %253 = vdwg.mxu0
  %vm254 = vcmask 7168
  %255 = vst.msk [vmem:[%s9] sm:$0xff] %vm254, %v251
  // Predicated region
  $region38: #{simple_regressor_forward.1} parent=0 // pred_check
    _
  $region39: #{simple_regressor_forward.1} parent=0 // pred_check_branch
    %257 = sbr.rel (0) target = $region41
  $region40: #{simple_regressor_forward.1} parent=0 // pred_region
    _
  $region41: #{simple_regressor_forward.1} parent=0 // pred_fallthru
    _
  // Predicated region
  $region42: #{simple_regressor_forward.1} parent=0 // pred_check
    _
  $region43: #{simple_regressor_forward.1} parent=0 // pred_check_branch
    %259 = sbr.rel (0) target = $region45
  $region44: #{simple_regressor_forward.1} parent=0 // pred_region
    _
  $region45: #{simple_regressor_forward.1} parent=0 // pred_fallthru
    _

</llo_original>
